<compile_context>
chip_gen: v7x
topology: tpu7x:2x2x1
jax: 0.10.0
libtpu: 0.0.40
codegen_flags: <defaults>
</compile_context>

<pallas_src>
import functools

import jax
import jax.numpy as jnp
from jax.experimental import pallas as pl
from jax.experimental.pallas import tpu as pltpu


def _round_up(x, m):
    return ((x + m - 1) // m) * m


def _has_two_tensorcores():
    """True on chips with 2 TensorCores that the kernel should split across."""
    try:
        kind = jax.devices()[0].device_kind.lower()
    except Exception:
        return False
    return ("v7" in kind) or ("7x" in kind)


# ---------------------------------------------------------------------------
# Pallas kernel: whole forward for one batch tile. Weights are full-array
# blocks with constant index_maps, so they are DMA'd once and stay resident
# in VMEM across the (tiny) batch grid.
# ---------------------------------------------------------------------------
def _ppo_critic_kernel(
    x_ref, h0_ref, w_obs_ref, w_gru_ref, w_val_ref, b_ref, out_ref,
    *, obs_dim, m1, m2, hid, hv,
):
    f32 = jnp.float32
    bf16 = jnp.bfloat16

    # --- bias / row pack: one segment per sublane row, all lane slices at
    #     offset 0 (no XLU rotates) ---
    b1 = b_ref[0:1, 0:m1]                 # (1, m1)  f32
    b2 = b_ref[1:2, 0:m2]                 # (1, m2)
    b_gru = b_ref[2:3, 0:4 * hid]         # (1, 4H)  (bir+bhr | biz+bhz | bin | bhn)
    bv = b_ref[3:4, 0:hv]                 # (1, hv)
    wo_row = b_ref[4:5, 0:hv]             # (1, hv)  value_out weight as a row
    bo = b_ref[5:6, 0:1]                  # (1, 1)   value_out bias

    # --- stacked obs-MLP weight (bf16) ---
    w1 = w_obs_ref[0:obs_dim, :]
    w2 = w_obs_ref[obs_dim:obs_dim + m1, :]

    x = x_ref[...]                        # (Bt, obs_dim) bf16 (cast in wrapper)
    h = h0_ref[...]                       # (Bt, hid)     f32

    # --- MLPObs: Linear + ReLU, twice (bf16 operands, f32 accumulate) ---
    h1 = jnp.maximum(jnp.dot(x, w1, preferred_element_type=f32) + b1, 0.0)
    h2 = jnp.maximum(
        jnp.dot(h1.astype(bf16), w2, preferred_element_type=f32) + b2, 0.0)

    # --- GRU single step: ONE fused matmul for all six gate products ---
    # lhs = [h2 | h]  (Bt, m2+hid);  w_gru = [[Wir Wiz Win 0],[Whr Whz 0 Whn]]
    lhs = jnp.concatenate([h2.astype(bf16), h.astype(bf16)], axis=-1)
    g = jnp.dot(lhs, w_gru_ref[...], preferred_element_type=f32) + b_gru

    # one 128-lane-wide sigmoid covering both r and z gates
    rz = jax.nn.sigmoid(g[:, 0:2 * hid])
    r = rz[:, 0:hid]
    z = rz[:, hid:2 * hid]
    n = jnp.tanh(g[:, 2 * hid:3 * hid] + r * g[:, 3 * hid:4 * hid])
    h_new = (1.0 - z) * n + z * h                       # (Bt, hid) f32

    # --- MLPBase (value hidden): Linear + ReLU ---
    v1 = jnp.maximum(
        jnp.dot(h_new.astype(bf16), w_val_ref[...],
                preferred_element_type=f32) + bv, 0.0)

    # --- value_out: Linear(hidden -> 1) as an XLU lane reduction ---
    val = jnp.sum(v1 * wo_row, axis=-1, keepdims=True) + bo   # (Bt, 1)

    # --- lane-dense output, written with two direct stores (no concat temp) ---
    out_ref[:, 0:hid] = h_new
    out_ref[:, hid:2 * hid] = jnp.broadcast_to(val, (h_new.shape[0], hid))


# ---------------------------------------------------------------------------
# Wrapper
# ---------------------------------------------------------------------------
def ppo_critic_forward(x, rnn_states, params, *, max_block_b=1024):
    """x: (B, obs_dim); rnn_states: (B, 1, H). Returns (values (B,1), (B,1,H))."""
    d = params["dims"]
    obs_dim, m1, m2, hid, hv = d["obs_dim"], d["m1"], d["m2"], d["hid"], d["hv"]

    B = x.shape[0]
    # x streamed in bf16 (the matmul already runs in bf16); h0 stays f32.
    x = x.astype(jnp.bfloat16)
    h0 = rnn_states.astype(jnp.float32).reshape(B, hid)

    two_tc = _has_two_tensorcores()
    if two_tc and B >= 32:
        # v7x: exactly two tiles so the two TensorCores split the batch.
        Bt = min(max_block_b, _round_up(pl.cdiv(B, 2), 16))
    else:
        # v5e / v6e (one TC): a single grid step if the batch fits the cap.
        Bt = B if B <= max_block_b else max_block_b
    grid = pl.cdiv(B, Bt)

    if grid == 1:
        dim_sem = ("arbitrary",)
    elif two_tc and grid == 2:
        dim_sem = (getattr(pltpu, "CORE_PARALLEL", "parallel"),)
    else:
        dim_sem = ("parallel",)

    kern = functools.partial(
        _ppo_critic_kernel, obs_dim=obs_dim, m1=m1, m2=m2, hid=hid, hv=hv)

    out = pl.pallas_call(
        kern,
        out_shape=jax.ShapeDtypeStruct((B, 2 * hid), jnp.float32),
        grid_spec=pltpu.PrefetchScalarGridSpec(
            num_scalar_prefetch=0,
            grid=(grid,),
            in_specs=[
                pl.BlockSpec((Bt, obs_dim), lambda i: (i, 0)),          # x (bf16)
                pl.BlockSpec((Bt, hid), lambda i: (i, 0)),              # h0 (f32)
                pl.BlockSpec(params["w_obs"].shape, lambda i: (0, 0)),  # resident
                pl.BlockSpec(params["w_gru"].shape, lambda i: (0, 0)),  # resident
                pl.BlockSpec(params["w_val"].shape, lambda i: (0, 0)),  # resident
                pl.BlockSpec(params["b_pack"].shape, lambda i: (0, 0)),  # resident
            ],
            out_specs=pl.BlockSpec((Bt, 2 * hid), lambda i: (i, 0)),
        ),
        compiler_params=pltpu.CompilerParams(dimension_semantics=dim_sem),
    )(x, h0, params["w_obs"], params["w_gru"], params["w_val"],
      params["b_pack"])

    h_new = out[:, :hid]
    values = out[:, hid:hid + 1]      # value is broadcast across lanes hid:2*hid
    return values, h_new.reshape(B, 1, hid)


# ---------------------------------------------------------------------------
# Deterministic parameter construction (torch default-like uniform init).
# Raw per-layer weights are built as (in, out) = torch_weight.T, then packed.
# ---------------------------------------------------------------------------
def _linear_params(key, fan_in, fan_out):
    kw, kb = jax.random.split(key)
    bound = 1.0 / jnp.sqrt(jnp.float32(fan_in))
    w = jax.random.uniform(kw, (fan_in, fan_out), jnp.float32, -bound, bound)
    b = jax.random.uniform(kb, (1, fan_out), jnp.float32, -bound, bound)
    return w, b


def make_params(obs_dim, mlp_hidden, gru_hidden, value_hidden, key):
    m1, m2 = mlp_hidden
    assert m1 == m2, "packed w_obs layout assumes equal obs-MLP widths"
    hid = gru_hidden
    hv = value_hidden[0]
    keys = jax.random.split(key, 10)

    w1, b1 = _linear_params(keys[0], obs_dim, m1)
    w2, b2 = _linear_params(keys[1], m1, m2)
    wir, bir = _linear_params(keys[2], m2, hid)
    wiz, biz = _linear_params(keys[3], m2, hid)
    win, bin_ = _linear_params(keys[4], m2, hid)
    whr, bhr = _linear_params(keys[5], hid, hid)
    whz, bhz = _linear_params(keys[6], hid, hid)
    whn, bhn = _linear_params(keys[7], hid, hid)
    wv, bv = _linear_params(keys[8], hid, hv)
    wo, bo = _linear_params(keys[9], hv, 1)

    # Packed obs-MLP weight: [w1 ; w2]  -> (obs_dim + m1, m1), bf16 storage.
    w_obs = jnp.concatenate([w1, w2], axis=0).astype(jnp.bfloat16)

    # Fused GRU weight: (m2 + hid, 4*hid) = [[Wir Wiz Win 0],[Whr Whz 0 Whn]]
    w_gru = jnp.zeros((m2 + hid, 4 * hid), jnp.float32)
    w_gru = w_gru.at[:m2, 0:hid].set(wir)
    w_gru = w_gru.at[:m2, hid:2 * hid].set(wiz)
    w_gru = w_gru.at[:m2, 2 * hid:3 * hid].set(win)
    w_gru = w_gru.at[m2:, 0:hid].set(whr)
    w_gru = w_gru.at[m2:, hid:2 * hid].set(whz)
    w_gru = w_gru.at[m2:, 3 * hid:4 * hid].set(whn)
    w_gru = w_gru.astype(jnp.bfloat16)

    w_val = wv.astype(jnp.bfloat16)

    # Bias / row pack (f32): one segment per sublane row, each starting at
    # lane 0 so the kernel never does an unaligned lane slice.
    #   row 0: b1   row 1: b2   row 2: b_gru (4H)   row 3: bv
    #   row 4: wo_row   row 5: bo   rows 6-7: zero padding
    P = max(4 * hid, 128)
    b_gru = jnp.concatenate([bir + bhr, biz + bhz, bin_, bhn], axis=-1)  # (1,4H)
    b_pack = jnp.zeros((8, P), jnp.float32)
    b_pack = b_pack.at[0, :m1].set(b1[0])
    b_pack = b_pack.at[1, :m2].set(b2[0])
    b_pack = b_pack.at[2, :4 * hid].set(b_gru[0])
    b_pack = b_pack.at[3, :hv].set(bv[0])
    b_pack = b_pack.at[4, :hv].set(wo[:, 0])
    b_pack = b_pack.at[5, 0].set(bo[0, 0])

    return {
        "w_obs": w_obs, "w_gru": w_gru, "w_val": w_val, "b_pack": b_pack,
        "dims": {"obs_dim": obs_dim, "m1": m1, "m2": m2, "hid": hid, "hv": hv},
    }


# ---------------------------------------------------------------------------
# Pure-JAX reference (same bf16 weights / f32 accumulate) for a sanity check.
# ---------------------------------------------------------------------------
def reference_forward(x, rnn_states, p):
    d = p["dims"]
    obs_dim, m1, m2, hid, hv = d["obs_dim"], d["m1"], d["m2"], d["hid"], d["hv"]
    f32, bf16 = jnp.float32, jnp.bfloat16

    B = x.shape[0]
    x = x.astype(f32)
    h = rnn_states.astype(f32).reshape(B, hid)

    b = p["b_pack"]
    b1, b2 = b[0:1, :m1], b[1:2, :m2]
    b_gru = b[2:3, :4 * hid]
    bv, wo_row, bo = b[3:4, :hv], b[4:5, :hv], b[5:6, 0:1]

    w12 = p["w_obs"]
    w1, w2 = w12[:obs_dim], w12[obs_dim:]

    def mm(a, w):
        return jnp.dot(a.astype(bf16), w, preferred_element_type=f32)

    h1 = jnp.maximum(mm(x, w1) + b1, 0.0)
    h2 = jnp.maximum(mm(h1, w2) + b2, 0.0)

    lhs = jnp.concatenate([h2.astype(bf16), h.astype(bf16)], axis=-1)
    g = jnp.dot(lhs, p["w_gru"], preferred_element_type=f32) + b_gru
    r = jax.nn.sigmoid(g[:, :hid])
    z = jax.nn.sigmoid(g[:, hid:2 * hid])
    n = jnp.tanh(g[:, 2 * hid:3 * hid] + r * g[:, 3 * hid:4 * hid])
    hn = (1.0 - z) * n + z * h

    v1 = jnp.maximum(mm(hn, p["w_val"]) + bv, 0.0)
    val = jnp.sum(v1 * wo_row, axis=-1, keepdims=True) + bo
    return val, hn.reshape(B, 1, hid)


if __name__ == "__main__":
    B = 64                 # small batch; grid=1 on 1-TC chips, 2x32 on v7x
    OBS_DIM = 64
    MLP_HIDDEN = (64, 64)
    GRU_HIDDEN = 64
    VALUE_HIDDEN = (64,)

    root = jax.random.PRNGKey(0)
    k_x, k_h, k_p = jax.random.split(root, 3)

    x = jax.random.normal(k_x, (B, OBS_DIM), jnp.float32)
    rnn_states = jax.random.normal(k_h, (B, 1, GRU_HIDDEN), jnp.float32)
    params = make_params(OBS_DIM, MLP_HIDDEN, GRU_HIDDEN, VALUE_HIDDEN, k_p)

    values, new_states = ppo_critic_forward(x, rnn_states, params)
    values = jax.block_until_ready(values)
    new_states = jax.block_until_ready(new_states)

    ref_values, ref_states = reference_forward(x, rnn_states, params)
    assert values.shape == (B, 1) and new_states.shape == (B, 1, GRU_HIDDEN)
    assert jnp.allclose(values, ref_values, atol=2e-3, rtol=2e-3)
    assert jnp.allclose(new_states, ref_states, atol=2e-3, rtol=2e-3)

    print("KERNEL_OK")
</pallas_src>

<mosaic_0001>
module attributes {stable_mosaic.version = 11 : i64} {
  func.func @_ppo_critic_kernel(%arg0: i32, %arg1: memref<64x64xbf16, #tpu.memory_space<vmem>>, %arg2: memref<64x64xf32, #tpu.memory_space<vmem>>, %arg3: memref<128x64xbf16, #tpu.memory_space<vmem>>, %arg4: memref<128x256xbf16, #tpu.memory_space<vmem>>, %arg5: memref<64x64xbf16, #tpu.memory_space<vmem>>, %arg6: memref<8x256xf32, #tpu.memory_space<vmem>>, %arg7: memref<64x128xf32, #tpu.memory_space<vmem>>) attributes {dimension_semantics = [#tpu.dimension_semantics<arbitrary>], iteration_bounds = array<i64: 1>, scalar_prefetch = 0 : i64, scratch_operands = 0 : i64, tpu.core_type = #tpu.core_type<tc>, window_params = [{transform_indices = @transform_0, window_bounds = array<i64: 64, 64>}, {transform_indices = @transform_1, window_bounds = array<i64: 64, 64>}, {pipeline_mode = #tpu.pipeline_mode<synchronous>, transform_indices = @transform_2, window_bounds = array<i64: 128, 64>}, {pipeline_mode = #tpu.pipeline_mode<synchronous>, transform_indices = @transform_3, window_bounds = array<i64: 128, 256>}, {pipeline_mode = #tpu.pipeline_mode<synchronous>, transform_indices = @transform_4, window_bounds = array<i64: 64, 64>}, {pipeline_mode = #tpu.pipeline_mode<synchronous>, transform_indices = @transform_5, window_bounds = array<i64: 8, 256>}, {transform_indices = @transform_6, window_bounds = array<i64: 64, 128>}]} {
    %c0 = arith.constant 0 : index
    %c0_0 = arith.constant 0 : index
    %0 = vector.load %arg6[%c0, %c0_0] : memref<8x256xf32, #tpu.memory_space<vmem>>, vector<1x64xf32>
    %c1 = arith.constant 1 : index
    %c0_1 = arith.constant 0 : index
    %1 = vector.load %arg6[%c1, %c0_1] : memref<8x256xf32, #tpu.memory_space<vmem>>, vector<1x64xf32>
    %c2 = arith.constant 2 : index
    %c0_2 = arith.constant 0 : index
    %2 = vector.load %arg6[%c2, %c0_2] : memref<8x256xf32, #tpu.memory_space<vmem>>, vector<1x256xf32>
    %c3 = arith.constant 3 : index
    %c0_3 = arith.constant 0 : index
    %3 = vector.load %arg6[%c3, %c0_3] : memref<8x256xf32, #tpu.memory_space<vmem>>, vector<1x64xf32>
    %c4 = arith.constant 4 : index
    %c0_4 = arith.constant 0 : index
    %4 = vector.load %arg6[%c4, %c0_4] : memref<8x256xf32, #tpu.memory_space<vmem>>, vector<1x64xf32>
    %c5 = arith.constant 5 : index
    %c0_5 = arith.constant 0 : index
    %5 = vector.load %arg6[%c5, %c0_5] : memref<8x256xf32, #tpu.memory_space<vmem>>, vector<1x1xf32>
    %c0_6 = arith.constant 0 : index
    %c0_7 = arith.constant 0 : index
    %6 = vector.load %arg3[%c0_6, %c0_7] : memref<128x64xbf16, #tpu.memory_space<vmem>>, vector<64x64xbf16>
    %c64 = arith.constant 64 : index
    %c0_8 = arith.constant 0 : index
    %7 = vector.load %arg3[%c64, %c0_8] : memref<128x64xbf16, #tpu.memory_space<vmem>>, vector<64x64xbf16>
    %c0_9 = arith.constant 0 : index
    %c0_10 = arith.constant 0 : index
    %8 = vector.load %arg1[%c0_9, %c0_10] : memref<64x64xbf16, #tpu.memory_space<vmem>>, vector<64x64xbf16>
    %c0_11 = arith.constant 0 : index
    %c0_12 = arith.constant 0 : index
    %9 = vector.load %arg2[%c0_11, %c0_12] : memref<64x64xf32, #tpu.memory_space<vmem>>, vector<64x64xf32>
    %cst = arith.constant dense<0.000000e+00> : vector<64x64xf32>
    %10 = tpu.matmul %8, %6, %cst {dimension_numbers = #tpu.dot_dimension_numbers<[1], [0], [0], [1], [0, 0, 1, 1], [], []>} : vector<64x64xbf16>, vector<64x64xbf16>, vector<64x64xf32> -> vector<64x64xf32>
    %11 = vector.broadcast %0 : vector<1x64xf32> to vector<64x64xf32>
    %12 = arith.addf %10, %11 : vector<64x64xf32>
    %cst_13 = arith.constant 0.000000e+00 : f32
    %13 = vector.broadcast %cst_13 : f32 to vector<64x64xf32>
    %14 = arith.maximumf %12, %13 : vector<64x64xf32>
    %15 = arith.truncf %14 : vector<64x64xf32> to vector<64x64xbf16>
    %cst_14 = arith.constant dense<0.000000e+00> : vector<64x64xf32>
    %16 = tpu.matmul %15, %7, %cst_14 {dimension_numbers = #tpu.dot_dimension_numbers<[1], [0], [0], [1], [0, 0, 1, 1], [], []>} : vector<64x64xbf16>, vector<64x64xbf16>, vector<64x64xf32> -> vector<64x64xf32>
    %17 = vector.broadcast %1 : vector<1x64xf32> to vector<64x64xf32>
    %18 = arith.addf %16, %17 : vector<64x64xf32>
    %cst_15 = arith.constant 0.000000e+00 : f32
    %19 = vector.broadcast %cst_15 : f32 to vector<64x64xf32>
    %20 = arith.maximumf %18, %19 : vector<64x64xf32>
    %21 = arith.truncf %20 : vector<64x64xf32> to vector<64x64xbf16>
    %22 = arith.truncf %9 : vector<64x64xf32> to vector<64x64xbf16>
    %23 = tpu.concatenate %21, %22 in 1 : vector<64x64xbf16>, vector<64x64xbf16> -> vector<64x128xbf16>
    %c0_16 = arith.constant 0 : index
    %c0_17 = arith.constant 0 : index
    %24 = vector.load %arg4[%c0_16, %c0_17] : memref<128x256xbf16, #tpu.memory_space<vmem>>, vector<128x256xbf16>
    %cst_18 = arith.constant dense<0.000000e+00> : vector<64x256xf32>
    %25 = tpu.matmul %23, %24, %cst_18 {dimension_numbers = #tpu.dot_dimension_numbers<[1], [0], [0], [1], [0, 0, 1, 1], [], []>} : vector<64x128xbf16>, vector<128x256xbf16>, vector<64x256xf32> -> vector<64x256xf32>
    %26 = vector.broadcast %2 : vector<1x256xf32> to vector<64x256xf32>
    %27 = arith.addf %25, %26 : vector<64x256xf32>
    %28 = vector.extract_strided_slice %27 {offsets = [0, 0], sizes = [64, 128], strides = [1, 1]} : vector<64x256xf32> to vector<64x128xf32>
    %29 = arith.negf %28 : vector<64x128xf32>
    %30 = math.exp %29 : vector<64x128xf32>
    %cst_19 = arith.constant 1.000000e+00 : f32
    %31 = vector.broadcast %cst_19 : f32 to vector<64x128xf32>
    %32 = arith.addf %31, %30 : vector<64x128xf32>
    %33 = arith.divf %31, %32 : vector<64x128xf32>
    %34 = vector.extract_strided_slice %33 {offsets = [0, 0], sizes = [64, 64], strides = [1, 1]} : vector<64x128xf32> to vector<64x64xf32>
    %35 = vector.extract_strided_slice %33 {offsets = [0, 64], sizes = [64, 64], strides = [1, 1]} : vector<64x128xf32> to vector<64x64xf32>
    %36 = vector.extract_strided_slice %27 {offsets = [0, 128], sizes = [64, 64], strides = [1, 1]} : vector<64x256xf32> to vector<64x64xf32>
    %37 = vector.extract_strided_slice %27 {offsets = [0, 192], sizes = [64, 64], strides = [1, 1]} : vector<64x256xf32> to vector<64x64xf32>
    %38 = arith.mulf %34, %37 : vector<64x64xf32>
    %39 = arith.addf %36, %38 : vector<64x64xf32>
    %40 = math.tanh %39 : vector<64x64xf32>
    %cst_20 = arith.constant 1.000000e+00 : f32
    %41 = vector.broadcast %cst_20 : f32 to vector<64x64xf32>
    %42 = arith.subf %41, %35 : vector<64x64xf32>
    %43 = arith.mulf %42, %40 : vector<64x64xf32>
    %44 = arith.mulf %35, %9 : vector<64x64xf32>
    %45 = arith.addf %43, %44 : vector<64x64xf32>
    %46 = arith.truncf %45 : vector<64x64xf32> to vector<64x64xbf16>
    %c0_21 = arith.constant 0 : index
    %c0_22 = arith.constant 0 : index
    %47 = vector.load %arg5[%c0_21, %c0_22] : memref<64x64xbf16, #tpu.memory_space<vmem>>, vector<64x64xbf16>
    %cst_23 = arith.constant dense<0.000000e+00> : vector<64x64xf32>
    %48 = tpu.matmul %46, %47, %cst_23 {dimension_numbers = #tpu.dot_dimension_numbers<[1], [0], [0], [1], [0, 0, 1, 1], [], []>} : vector<64x64xbf16>, vector<64x64xbf16>, vector<64x64xf32> -> vector<64x64xf32>
    %49 = vector.broadcast %3 : vector<1x64xf32> to vector<64x64xf32>
    %50 = arith.addf %48, %49 : vector<64x64xf32>
    %cst_24 = arith.constant 0.000000e+00 : f32
    %51 = vector.broadcast %cst_24 : f32 to vector<64x64xf32>
    %52 = arith.maximumf %50, %51 : vector<64x64xf32>
    %53 = vector.broadcast %4 : vector<1x64xf32> to vector<64x64xf32>
    %54 = arith.mulf %52, %53 : vector<64x64xf32>
    %cst_25 = arith.constant dense<0.000000e+00> : vector<64xf32>
    %55 = vector.multi_reduction <add>, %54, %cst_25 [1] : vector<64x64xf32> to vector<64xf32>
    %56 = vector.shape_cast %55 : vector<64xf32> to vector<64x1xf32>
    %57 = vector.broadcast %5 : vector<1x1xf32> to vector<64x1xf32>
    %58 = arith.addf %56, %57 : vector<64x1xf32>
    %c0_26 = arith.constant 0 : index
    %c0_27 = arith.constant 0 : index
    %59 = vector.load %arg7[%c0_26, %c0_27] : memref<64x128xf32, #tpu.memory_space<vmem>>, vector<64x64xf32>
    tpu.vector_store %arg7[%c0_26, %c0_27], %45 {strides = array<i32>} : memref<64x128xf32, #tpu.memory_space<vmem>>, vector<64x64xf32>,
    %60 = vector.shape_cast %58 : vector<64x1xf32> to vector<64x1xf32>
    %61 = vector.broadcast %60 : vector<64x1xf32> to vector<64x64xf32>
    %c0_28 = arith.constant 0 : index
    %c64_29 = arith.constant 64 : index
    %62 = vector.load %arg7[%c0_28, %c64_29] : memref<64x128xf32, #tpu.memory_space<vmem>>, vector<64x64xf32>
    tpu.vector_store %arg7[%c0_28, %c64_29], %61 {strides = array<i32>} : memref<64x128xf32, #tpu.memory_space<vmem>>, vector<64x64xf32>,
    return
  }
  func.func @transform_0(%arg0: i32) -> (i32, i32) {
    %c0_i32 = arith.constant 0 : i32
    %c0_i32_0 = arith.constant 0 : i32
    return %arg0, %c0_i32 : i32, i32
  }
  func.func @transform_1(%arg0: i32) -> (i32, i32) {
    %c0_i32 = arith.constant 0 : i32
    %c0_i32_0 = arith.constant 0 : i32
    return %arg0, %c0_i32 : i32, i32
  }
  func.func @transform_2(%arg0: i32) -> (i32, i32) {
    %c0_i32 = arith.constant 0 : i32
    %c0_i32_0 = arith.constant 0 : i32
    %c0_i32_1 = arith.constant 0 : i32
    return %c0_i32, %c0_i32_0 : i32, i32
  }
  func.func @transform_3(%arg0: i32) -> (i32, i32) {
    %c0_i32 = arith.constant 0 : i32
    %c0_i32_0 = arith.constant 0 : i32
    %c0_i32_1 = arith.constant 0 : i32
    return %c0_i32, %c0_i32_0 : i32, i32
  }
  func.func @transform_4(%arg0: i32) -> (i32, i32) {
    %c0_i32 = arith.constant 0 : i32
    %c0_i32_0 = arith.constant 0 : i32
    %c0_i32_1 = arith.constant 0 : i32
    return %c0_i32, %c0_i32_0 : i32, i32
  }
  func.func @transform_5(%arg0: i32) -> (i32, i32) {
    %c0_i32 = arith.constant 0 : i32
    %c0_i32_0 = arith.constant 0 : i32
    %c0_i32_1 = arith.constant 0 : i32
    return %c0_i32, %c0_i32_0 : i32, i32
  }
  func.func @transform_6(%arg0: i32) -> (i32, i32) {
    %c0_i32 = arith.constant 0 : i32
    %c0_i32_0 = arith.constant 0 : i32
    return %arg0, %c0_i32 : i32, i32
  }
}

</mosaic_0001>

<llo_original>
// kernel: tpu_custom_call.1
$region0: #{tpu_custom_call.1}
  #allocation0 [shape = 'u32[]', space=smem, size = 0x4, offset = 0x4, fixed_abs, tag = 'smem constant byte address 0x4 - core index']
  #allocation1 [shape = 'u32[144,128]{1,0:T(1,128)}', space=vmem, size = 0x12000, scoped, tag = 'internal scratch']
  %s0 = inlined_call_operand.vmem [shape: bf16[64,64], index: 0, kind: input, shape index: {}]
  %s1 = inlined_call_operand.vmem [shape: f32[64,64], index: 1, kind: input, shape index: {}]
  %s2 = inlined_call_operand.vmem [shape: bf16[128,64], index: 2, kind: input, shape index: {}]
  %s3 = inlined_call_operand.hbm [shape: bf16[128,256], index: 3, kind: input, shape index: {}]
  %s4 = inlined_call_operand.hbm [shape: bf16[64,64], index: 4, kind: input, shape index: {}]
  %s5 = inlined_call_operand.vmem [shape: f32[8,256], index: 5, kind: input, shape index: {}]
  %s6 = inlined_call_operand.hbm [shape: f32[64,128], index: 6, kind: output, shape index: {}]
  %s7 = sld [smem:[#allocation0]]
  $region42: #{tpu_custom_call.1} parent=0
    _
  %s9 = ssub.s32 1, %s7
  %s10 = scalar_select 0, %s9, %s7
  $region1: #{tpu_custom_call.1} parent=0
    #allocation2 [shape = 'u8[65536]{0}', space=vmem, size = 0x10000, scoped, tag = 'input window, operand 3, single buffered']
    #allocation3 [shape = 's32[1]{0}', space=sflag, size = 0x4, scoped, tag = 'scoped memory for tpu_custom_call.1']
    #allocation4 [shape = 's32[1]{0}', space=sflag, size = 0x4, scoped, tag = 'scoped memory for tpu_custom_call.1']
    #allocation5 [shape = 'u8[16384]{0}', space=vmem, size = 0x4000, scoped, tag = 'input window, operand 4, single buffered']
    #allocation6 [shape = 's32[1]{0}', space=sflag, size = 0x4, scoped, tag = 'scoped memory for tpu_custom_call.1']
    #allocation7 [shape = 'u8[32768]{0}', space=vmem, size = 0x8000, scoped, tag = 'output window, operand 0, single buffered']
    %11 = vsyncpa [#allocation3], 0
    %12 = vsyncpa [#allocation6], 0
    %13 = vsyncpa [#allocation4], 0
    // Predicated region
    $region2: #{tpu_custom_call.1} parent=1 // pred_check
      _
    $region3: #{tpu_custom_call.1} parent=1 // pred_check_branch
      %15 = sbr.rel (0) target = $region5
    $region4: #{tpu_custom_call.1} parent=1 // pred_region
      _
    $region5: #{tpu_custom_call.1} parent=1 // pred_fallthru
      _
    // Predicated region
    $region6: #{tpu_custom_call.1} parent=1 // pred_check
      _
    $region7: #{tpu_custom_call.1} parent=1 // pred_check_branch
      %17 = sbr.rel (0) target = $region9
    $region8: #{tpu_custom_call.1} parent=1 // pred_region
      _
    $region9: #{tpu_custom_call.1} parent=1 // pred_fallthru
      _
    // Predicated region
    $region10: #{tpu_custom_call.1} parent=1 // pred_check
      _
    $region11: #{tpu_custom_call.1} parent=1 // pred_check_branch
      %19 = sbr.rel (0) target = $region13
    $region12: #{tpu_custom_call.1} parent=1 // pred_region
      _
    $region13: #{tpu_custom_call.1} parent=1 // pred_fallthru
      _
    // Predicated region
    $region14: #{tpu_custom_call.1} parent=1 // pred_check
      _
    $region15: #{tpu_custom_call.1} parent=1 // pred_check_branch
      %21 = sbr.rel (0) target = $region17
    $region16: #{tpu_custom_call.1} parent=1 // pred_region
      %s23 = ssub.s32 2048, 2048
      %24 = vsyncadd [#allocation3], %s23
      %s25 = sshll.u32 [#allocation2], 4
      %s26 = int_to_ptr.vmem [resolvable:$true] %s25
      %31 = dma.hbm_to_vmem [thread:$0]  %s3, 2048, %s26, [#allocation3], 128, 128, 8
    $region17: #{tpu_custom_call.1} parent=1 // pred_fallthru
      _
    // Predicated region
    $region18: #{tpu_custom_call.1} parent=1 // pred_check
      _
    $region19: #{tpu_custom_call.1} parent=1 // pred_check_branch
      %33 = sbr.rel (0) target = $region21
    $region20: #{tpu_custom_call.1} parent=1 // pred_region
      %s35 = ssub.s32 512, 512
      %36 = vsyncadd [#allocation6], %s35
      %s37 = sshll.u32 [#allocation5], 4
      %s38 = int_to_ptr.vmem [resolvable:$true] %s37
      %43 = dma.hbm_to_vmem [thread:$0]  %s4, 512, %s38, [#allocation6], 64, 64, 4
    $region21: #{tpu_custom_call.1} parent=1 // pred_fallthru
      _
    // Predicated region
    $region22: #{tpu_custom_call.1} parent=1 // pred_check
      _
    $region23: #{tpu_custom_call.1} parent=1 // pred_check_branch
      %45 = sbr.rel (0) target = $region25
    $region24: #{tpu_custom_call.1} parent=1 // pred_region
      _
    $region25: #{tpu_custom_call.1} parent=1 // pred_fallthru
      _
    // Predicated region
    $region26: #{tpu_custom_call.1} parent=1 // pred_check
      _
    $region27: #{tpu_custom_call.1} parent=1 // pred_check_branch
      %47 = sbr.rel (0) target = $region29
    $region28: #{tpu_custom_call.1} parent=1 // pred_region
      %48 = dma.done [#allocation3], 2048
    $region29: #{tpu_custom_call.1} parent=1 // pred_fallthru
      _
    // Predicated region
    $region30: #{tpu_custom_call.1} parent=1 // pred_check
      _
    $region31: #{tpu_custom_call.1} parent=1 // pred_check_branch
      %50 = sbr.rel (0) target = $region33
    $region32: #{tpu_custom_call.1} parent=1 // pred_region
      %51 = dma.done [#allocation6], 512
    $region33: #{tpu_custom_call.1} parent=1 // pred_fallthru
      _
    %v53 = vld [vmem:[%s5] ss:$0 sm:$0xff]
    %v54 = vld [vmem:[%s5 + $0x1] ss:$0 sm:$0xff]
    %s55 = scalar_lea.vmem %s5, 2
    %v56 = vld [vmem:[%s55] ss:$8 sm:$0x3]
    %v57 = vld [vmem:[%s5 + $0x3] ss:$0 sm:$0xff]
    %v58 = vld [vmem:[%s5 + $0x4] ss:$0 sm:$0xff]
    %v59 = vld [vmem:[%s5 + $0x5] ss:$0 sm:$0xff]
    %v60 = vld [vmem:[%s2] sm:$0xf]
    %v61 = vld [vmem:[%s2 + $0x4] sm:$0xf]
    %v62 = vld [vmem:[%s2 + $0x8] sm:$0xf]
    %v63 = vld [vmem:[%s2 + $0xc] sm:$0xf]
    %v64 = vld [vmem:[%s2 + $0x10] sm:$0xf]
    %v65 = vld [vmem:[%s2 + $0x14] sm:$0xf]
    %v66 = vld [vmem:[%s2 + $0x18] sm:$0xf]
    %v67 = vld [vmem:[%s2 + $0x1c] sm:$0xf]
    %v68 = vld [vmem:[%s2 + $0x20] sm:$0xf]
    %v69 = vld [vmem:[%s2 + $0x24] sm:$0xf]
    %v70 = vld [vmem:[%s2 + $0x28] sm:$0xf]
    %v71 = vld [vmem:[%s2 + $0x2c] sm:$0xf]
    %v72 = vld [vmem:[%s2 + $0x30] sm:$0xf]
    %v73 = vld [vmem:[%s2 + $0x34] sm:$0xf]
    %v74 = vld [vmem:[%s2 + $0x38] sm:$0xf]
    %v75 = vld [vmem:[%s2 + $0x3c] sm:$0xf]
    %v76 = vld [vmem:[%s0] sm:$0xf]
    %v77 = vld [vmem:[%s0 + $0x4] sm:$0xf]
    %v78 = vld [vmem:[%s0 + $0x8] sm:$0xf]
    %v79 = vld [vmem:[%s0 + $0xc] sm:$0xf]
    %v80 = vld [vmem:[%s0 + $0x10] sm:$0xf]
    %v81 = vld [vmem:[%s0 + $0x14] sm:$0xf]
    %v82 = vld [vmem:[%s0 + $0x18] sm:$0xf]
    %v83 = vld [vmem:[%s0 + $0x1c] sm:$0xf]
    %v84 = vld [vmem:[%s1] sm:$0xff]
    %v85 = vld [vmem:[%s1 + $0x8] sm:$0xff]
    %v86 = vld [vmem:[%s1 + $0x10] sm:$0xff]
    %v87 = vld [vmem:[%s1 + $0x18] sm:$0xff]
    %v88 = vld [vmem:[%s1 + $0x20] sm:$0xff]
    %v89 = vld [vmem:[%s1 + $0x28] sm:$0xff]
    %v90 = vld [vmem:[%s1 + $0x30] sm:$0xff]
    %v91 = vld [vmem:[%s1 + $0x38] sm:$0xff]
    %v100 = vunpack.c.l.b16 %v76
    %v101 = vunpack.c.l.b16 %v77
    %v102 = vunpack.c.l.b16 %v78
    %v103 = vunpack.c.l.b16 %v79
    %v104 = vunpack.c.l.b16 %v80
    %v105 = vunpack.c.l.b16 %v81
    %v106 = vunpack.c.l.b16 %v82
    %v107 = vunpack.c.l.b16 %v83
    %v108 = vpack.c.b16 %v101, %v100
    %v109 = vpack.c.b16 %v103, %v102
    %v110 = vpack.c.b16 %v105, %v104
    %v111 = vpack.c.b16 %v107, %v106
    %v120 = vunpack.c.l.b16 %v60
    %v121 = vunpack.c.l.b16 %v61
    %v122 = vunpack.c.l.b16 %v62
    %v123 = vunpack.c.l.b16 %v63
    %v124 = vunpack.c.l.b16 %v64
    %v125 = vunpack.c.l.b16 %v65
    %v126 = vunpack.c.l.b16 %v66
    %v127 = vunpack.c.l.b16 %v67
    %v128 = vpack.c.b16 %v121, %v120
    %v129 = vpack.c.b16 %v123, %v122
    %v130 = vpack.c.b16 %v125, %v124
    %v131 = vpack.c.b16 %v127, %v126
    %vm136 = vcmask 523264
    %v138 = vsel %vm136, %v108, 0
    %v141 = vsel %vm136, %v109, 0
    %v144 = vsel %vm136, %v110, 0
    %v147 = vsel %vm136, %v111, 0
    %149 = vmatprep.subr.bf16.mxu0 0
    %150 = vmatpush1.bf16.msra.mxu0 %v128
    %151 = vmatprep.subr.bf16.mxu0 0
    %152 = vmatpush1.bf16.msra.mxu0 %v129
    %153 = vmatprep.subr.bf16.mxu0 0
    %154 = vmatpush1.bf16.msra.mxu0 %v130
    %155 = vmatprep.subr.bf16.mxu0 0
    %156 = vmatpush1.bf16.msra.mxu0 %v131
    %157 = vmatprep.subr.bf16.mxu0 0
    %158 = vmatpush1.bf16.msra.mxu0 0
    %159 = vmatprep.subr.bf16.mxu0 0
    %160 = vmatpush1.bf16.msra.mxu0 0
    %161 = vmatprep.subr.bf16.mxu0 0
    %162 = vmatpush1.bf16.msra.mxu0 0
    %163 = vmatprep.subr.bf16.mxu0 0
    %164 = vmatpush1.bf16.msra.mxu0 0
    %165 = vmatprep.subr.bf16.mxu0 0
    %166 = vmatpush1.bf16.msra.mxu0 0
    %167 = vmatprep.subr.bf16.mxu0 0
    %168 = vmatpush1.bf16.msra.mxu0 0
    %169 = vmatprep.subr.bf16.mxu0 0
    %170 = vmatpush1.bf16.msra.mxu0 0
    %171 = vmatprep.subr.bf16.mxu0 0
    %172 = vmatpush1.bf16.msra.mxu0 0
    %173 = vmatprep.subr.bf16.mxu0 0
    %174 = vmatpush1.bf16.msra.mxu0 0
    %175 = vmatprep.subr.bf16.mxu0 0
    %176 = vmatpush1.bf16.msra.mxu0 0
    %177 = vmatprep.subr.bf16.mxu0 0
    %178 = vmatpush1.bf16.msra.mxu0 0
    %179 = vmatprep.subr.bf16.mxu0 0
    %180 = vmatpush1.bf16.msra.mxu0 0
    %181 = vmatprep.mubr.bf16.mxu0 0
    %182 = vmatmul.mubr.bf16.gmra.mrb[0].mxu0 %v138
    %v183 = vpop.f32.mrb[0].mxu0
    %v184 = vadd.f32 %v53, %v183
    %v185 = vpop.f32.mrb[0].mxu0
    %v186 = vpop.f32.mrb[0].mxu0
    %v187 = vadd.f32 %v53, %v186
    %v188 = vpop.f32.mrb[0].mxu0
    %189 = vmatprep.mubr.bf16.mxu0 0
    %190 = vmatmul.mubr.bf16.gmra.mrb[0].mxu0 %v141
    %v191 = vpop.f32.mrb[0].mxu0
    %v192 = vadd.f32 %v53, %v191
    %v193 = vpop.f32.mrb[0].mxu0
    %v194 = vpop.f32.mrb[0].mxu0
    %v195 = vadd.f32 %v53, %v194
    %v196 = vpop.f32.mrb[0].mxu0
    %197 = vmatprep.mubr.bf16.mxu0 0
    %198 = vmatmul.mubr.bf16.gmra.mrb[0].mxu0 %v144
    %v199 = vpop.f32.mrb[0].mxu0
    %v200 = vadd.f32 %v53, %v199
    %v201 = vpop.f32.mrb[0].mxu0
    %v202 = vpop.f32.mrb[0].mxu0
    %v203 = vadd.f32 %v53, %v202
    %v204 = vpop.f32.mrb[0].mxu0
    %205 = vmatprep.mubr.bf16.mxu0 0
    %206 = vmatmul.mubr.bf16.gmra.mrb[0].mxu0 %v147
    %v207 = vpop.f32.mrb[0].mxu0
    %v208 = vadd.f32 %v53, %v207
    %v209 = vpop.f32.mrb[0].mxu0
    %v210 = vpop.f32.mrb[0].mxu0
    %v211 = vadd.f32 %v53, %v210
    %v212 = vpop.f32.mrb[0].mxu0
    %213 = vdwg.mxu0
    %v214 = vmax.f32 %v184, 0.0
    %v215 = vmax.f32 %v187, 0.0
    %v216 = vmax.f32 %v192, 0.0
    %v217 = vmax.f32 %v195, 0.0
    %v218 = vmax.f32 %v200, 0.0
    %v219 = vmax.f32 %v203, 0.0
    %v220 = vmax.f32 %v208, 0.0
    %v221 = vmax.f32 %v211, 0.0
    %v222 = vpack.c.bf16 %v215, %v214
    %v223 = vpack.c.bf16 %v217, %v216
    %v224 = vpack.c.bf16 %v219, %v218
    %v225 = vpack.c.bf16 %v221, %v220
    %v234 = vunpack.c.l.b16 %v68
    %v235 = vunpack.c.l.b16 %v69
    %v236 = vunpack.c.l.b16 %v70
    %v237 = vunpack.c.l.b16 %v71
    %v238 = vunpack.c.l.b16 %v72
    %v239 = vunpack.c.l.b16 %v73
    %v240 = vunpack.c.l.b16 %v74
    %v241 = vunpack.c.l.b16 %v75
    %v242 = vpack.c.b16 %v235, %v234
    %v243 = vpack.c.b16 %v237, %v236
    %v244 = vpack.c.b16 %v239, %v238
    %v245 = vpack.c.b16 %v241, %v240
    %v251 = vsel %vm136, %v222, 0
    %v254 = vsel %vm136, %v223, 0
    %v257 = vsel %vm136, %v224, 0
    %v260 = vsel %vm136, %v225, 0
    %262 = vmatprep.subr.bf16.mxu0 0
    %263 = vmatpush1.bf16.msra.mxu0 %v242
    %264 = vmatprep.subr.bf16.mxu0 0
    %265 = vmatpush1.bf16.msra.mxu0 %v243
    %266 = vmatprep.subr.bf16.mxu0 0
    %267 = vmatpush1.bf16.msra.mxu0 %v244
    %268 = vmatprep.subr.bf16.mxu0 0
    %269 = vmatpush1.bf16.msra.mxu0 %v245
    %270 = vmatprep.subr.bf16.mxu0 0
    %271 = vmatpush1.bf16.msra.mxu0 0
    %272 = vmatprep.subr.bf16.mxu0 0
    %273 = vmatpush1.bf16.msra.mxu0 0
    %274 = vmatprep.subr.bf16.mxu0 0
    %275 = vmatpush1.bf16.msra.mxu0 0
    %276 = vmatprep.subr.bf16.mxu0 0
    %277 = vmatpush1.bf16.msra.mxu0 0
    %278 = vmatprep.subr.bf16.mxu0 0
    %279 = vmatpush1.bf16.msra.mxu0 0
    %280 = vmatprep.subr.bf16.mxu0 0
    %281 = vmatpush1.bf16.msra.mxu0 0
    %282 = vmatprep.subr.bf16.mxu0 0
    %283 = vmatpush1.bf16.msra.mxu0 0
    %284 = vmatprep.subr.bf16.mxu0 0
    %285 = vmatpush1.bf16.msra.mxu0 0
    %286 = vmatprep.subr.bf16.mxu0 0
    %287 = vmatpush1.bf16.msra.mxu0 0
    %288 = vmatprep.subr.bf16.mxu0 0
    %289 = vmatpush1.bf16.msra.mxu0 0
    %290 = vmatprep.subr.bf16.mxu0 0
    %291 = vmatpush1.bf16.msra.mxu0 0
    %292 = vmatprep.subr.bf16.mxu0 0
    %293 = vmatpush1.bf16.msra.mxu0 0
    %294 = vmatprep.mubr.bf16.mxu0 0
    %295 = vmatmul.mubr.bf16.gmra.mrb[0].mxu0 %v251
    %v296 = vpop.f32.mrb[0].mxu0
    %v297 = vadd.f32 %v54, %v296
    %v298 = vpop.f32.mrb[0].mxu0
    %v299 = vpop.f32.mrb[0].mxu0
    %v300 = vadd.f32 %v54, %v299
    %v301 = vpop.f32.mrb[0].mxu0
    %302 = vmatprep.mubr.bf16.mxu0 0
    %303 = vmatmul.mubr.bf16.gmra.mrb[0].mxu0 %v254
    %v304 = vpop.f32.mrb[0].mxu0
    %v305 = vadd.f32 %v54, %v304
    %v306 = vpop.f32.mrb[0].mxu0
    %v307 = vpop.f32.mrb[0].mxu0
    %v308 = vadd.f32 %v54, %v307
    %v309 = vpop.f32.mrb[0].mxu0
    %310 = vmatprep.mubr.bf16.mxu0 0
    %311 = vmatmul.mubr.bf16.gmra.mrb[0].mxu0 %v257
    %v312 = vpop.f32.mrb[0].mxu0
    %v313 = vadd.f32 %v54, %v312
    %v314 = vpop.f32.mrb[0].mxu0
    %v315 = vpop.f32.mrb[0].mxu0
    %v316 = vadd.f32 %v54, %v315
    %v317 = vpop.f32.mrb[0].mxu0
    %318 = vmatprep.mubr.bf16.mxu0 0
    %319 = vmatmul.mubr.bf16.gmra.mrb[0].mxu0 %v260
    %v320 = vpop.f32.mrb[0].mxu0
    %v321 = vadd.f32 %v54, %v320
    %v322 = vpop.f32.mrb[0].mxu0
    %v323 = vpop.f32.mrb[0].mxu0
    %v324 = vadd.f32 %v54, %v323
    %v325 = vpop.f32.mrb[0].mxu0
    %326 = vdwg.mxu0
    %v327 = vmax.f32 %v297, 0.0
    %v328 = vmax.f32 %v300, 0.0
    %v329 = vmax.f32 %v305, 0.0
    %v330 = vmax.f32 %v308, 0.0
    %v331 = vmax.f32 %v313, 0.0
    %v332 = vmax.f32 %v316, 0.0
    %v333 = vmax.f32 %v321, 0.0
    %v334 = vmax.f32 %v324, 0.0
    %v335 = vpack.c.bf16 %v328, %v327
    %v336 = vpack.c.bf16 %v330, %v329
    %v337 = vpack.c.bf16 %v332, %v331
    %v338 = vpack.c.bf16 %v334, %v333
    %v339 = vpack.c.bf16 %v85, %v84
    %v340 = vpack.c.bf16 %v87, %v86
    %v341 = vpack.c.bf16 %v89, %v88
    %v342 = vpack.c.bf16 %v91, %v90
    %347 = vrot.lane.b32.xlu0 %v339, 64
    %v348 = vpop.permute.xlu0 %347
    %349 = vrot.lane.b32.xlu0 %v340, 64
    %v350 = vpop.permute.xlu0 %349
    %351 = vrot.lane.b32.xlu0 %v341, 64
    %v352 = vpop.permute.xlu0 %351
    %353 = vrot.lane.b32.xlu0 %v342, 64
    %v354 = vpop.permute.xlu0 %353
    %v357 = vsel %vm136, %v335, %v348
    %v361 = vsel %vm136, %v336, %v350
    %v365 = vsel %vm136, %v337, %v352
    %v369 = vsel %vm136, %v338, %v354
    %v371 = vld [vmem:[#allocation2] sm:$0xff]
    %v372 = vld [vmem:[#allocation2 + $0x8] sm:$0xff]
    %v373 = vld [vmem:[#allocation2 + $0x10] sm:$0xff]
    %v374 = vld [vmem:[#allocation2 + $0x18] sm:$0xff]
    %v375 = vld [vmem:[#allocation2 + $0x20] sm:$0xff]
    %v376 = vld [vmem:[#allocation2 + $0x28] sm:$0xff]
    %v377 = vld [vmem:[#allocation2 + $0x30] sm:$0xff]
    %v378 = vld [vmem:[#allocation2 + $0x38] sm:$0xff]
    %v379 = vld [vmem:[#allocation2 + $0x40] sm:$0xff]
    %v380 = vld [vmem:[#allocation2 + $0x48] sm:$0xff]
    %v381 = vld [vmem:[#allocation2 + $0x50] sm:$0xff]
    %v382 = vld [vmem:[#allocation2 + $0x58] sm:$0xff]
    %v383 = vld [vmem:[#allocation2 + $0x60] sm:$0xff]
    %v384 = vld [vmem:[#allocation2 + $0x68] sm:$0xff]
    %v385 = vld [vmem:[#allocation2 + $0x70] sm:$0xff]
    %v386 = vld [vmem:[#allocation2 + $0x78] sm:$0xff]
    %v388 = vlaneseq
    %v389 = vshrl.u32 %v388, 7
    %v390 = vsub.s32 0, %v389
    %v391 = vrot.slane %v56, %v390
    %v392 = vlaneseq
    %v393 = vshrl.u32 %v392, 7
    %v394 = vsub.s32 1, %v393
    %v395 = vrot.slane %v56, %v394
    %v414 = vunpack.c.l.b16 %v371
    %v415 = vunpack.c.h.b16 %v371
    %v416 = vunpack.c.l.b16 %v372
    %v417 = vunpack.c.h.b16 %v372
    %v418 = vunpack.c.l.b16 %v373
    %v419 = vunpack.c.h.b16 %v373
    %v420 = vunpack.c.l.b16 %v374
    %v421 = vunpack.c.h.b16 %v374
    %v422 = vunpack.c.l.b16 %v375
    %v423 = vunpack.c.h.b16 %v375
    %v424 = vunpack.c.l.b16 %v376
    %v425 = vunpack.c.h.b16 %v376
    %v426 = vunpack.c.l.b16 %v377
    %v427 = vunpack.c.h.b16 %v377
    %v428 = vunpack.c.l.b16 %v378
    %v429 = vunpack.c.h.b16 %v378
    %v430 = vunpack.c.l.b16 %v379
    %v431 = vunpack.c.h.b16 %v379
    %v432 = vunpack.c.l.b16 %v380
    %v433 = vunpack.c.h.b16 %v380
    %v434 = vunpack.c.l.b16 %v381
    %v435 = vunpack.c.h.b16 %v381
    %v436 = vunpack.c.l.b16 %v382
    %v437 = vunpack.c.h.b16 %v382
    %v438 = vunpack.c.l.b16 %v383
    %v439 = vunpack.c.h.b16 %v383
    %v440 = vunpack.c.l.b16 %v384
    %v441 = vunpack.c.h.b16 %v384
    %v442 = vunpack.c.l.b16 %v385
    %v443 = vunpack.c.h.b16 %v385
    %v444 = vunpack.c.l.b16 %v386
    %v445 = vunpack.c.h.b16 %v386
    %v446 = vpack.c.b16 %v416, %v414
    %v447 = vpack.c.b16 %v417, %v415
    %v448 = vpack.c.b16 %v420, %v418
    %v449 = vpack.c.b16 %v421, %v419
    %v450 = vpack.c.b16 %v424, %v422
    %v451 = vpack.c.b16 %v425, %v423
    %v452 = vpack.c.b16 %v428, %v426
    %v453 = vpack.c.b16 %v429, %v427
    %v454 = vpack.c.b16 %v432, %v430
    %v455 = vpack.c.b16 %v433, %v431
    %v456 = vpack.c.b16 %v436, %v434
    %v457 = vpack.c.b16 %v437, %v435
    %v458 = vpack.c.b16 %v440, %v438
    %v459 = vpack.c.b16 %v441, %v439
    %v460 = vpack.c.b16 %v444, %v442
    %v461 = vpack.c.b16 %v445, %v443
    %478 = vmatprep.subr.bf16.mxu0 %v447
    %479 = vmatpush1.bf16.msra.mxu0 %v446
    %480 = vmatprep.subr.bf16.mxu0 %v449
    %481 = vmatpush1.bf16.msra.mxu0 %v448
    %482 = vmatprep.subr.bf16.mxu0 %v451
    %483 = vmatpush1.bf16.msra.mxu0 %v450
    %484 = vmatprep.subr.bf16.mxu0 %v453
    %485 = vmatpush1.bf16.msra.mxu0 %v452
    %486 = vmatprep.subr.bf16.mxu0 %v455
    %487 = vmatpush1.bf16.msra.mxu0 %v454
    %488 = vmatprep.subr.bf16.mxu0 %v457
    %489 = vmatpush1.bf16.msra.mxu0 %v456
    %490 = vmatprep.subr.bf16.mxu0 %v459
    %491 = vmatpush1.bf16.msra.mxu0 %v458
    %492 = vmatprep.subr.bf16.mxu0 %v461
    %493 = vmatpush1.bf16.msra.mxu0 %v460
    %494 = vmatprep.subr.bf16.mxu0 0
    %495 = vmatpush1.bf16.msra.mxu0 0
    %496 = vmatprep.subr.bf16.mxu0 0
    %497 = vmatpush1.bf16.msra.mxu0 0
    %498 = vmatprep.subr.bf16.mxu0 0
    %499 = vmatpush1.bf16.msra.mxu0 0
    %500 = vmatprep.subr.bf16.mxu0 0
    %501 = vmatpush1.bf16.msra.mxu0 0
    %502 = vmatprep.subr.bf16.mxu0 0
    %503 = vmatpush1.bf16.msra.mxu0 0
    %504 = vmatprep.subr.bf16.mxu0 0
    %505 = vmatpush1.bf16.msra.mxu0 0
    %506 = vmatprep.subr.bf16.mxu0 0
    %507 = vmatpush1.bf16.msra.mxu0 0
    %508 = vmatprep.subr.bf16.mxu0 0
    %509 = vmatpush1.bf16.msra.mxu0 0
    %510 = vmatprep.mubr.bf16.mxu0 0
    %511 = vmatmul.mubr.bf16.gmra.mrb[0].mxu0 %v357
    %v512 = vpop.f32.mrb[0].mxu0
    %v513 = vadd.f32 %v391, %v512
    %v514 = vpop.f32.mrb[0].mxu0
    %v515 = vadd.f32 %v395, %v514
    %v516 = vpop.f32.mrb[0].mxu0
    %v517 = vadd.f32 %v391, %v516
    %v518 = vpop.f32.mrb[0].mxu0
    %v519 = vadd.f32 %v395, %v518
    %520 = vmatprep.mubr.bf16.mxu0 0
    %521 = vmatmul.mubr.bf16.gmra.mrb[0].mxu0 %v361
    %v522 = vpop.f32.mrb[0].mxu0
    %v523 = vadd.f32 %v391, %v522
    %v524 = vpop.f32.mrb[0].mxu0
    %v525 = vadd.f32 %v395, %v524
    %v526 = vpop.f32.mrb[0].mxu0
    %v527 = vadd.f32 %v391, %v526
    %v528 = vpop.f32.mrb[0].mxu0
    %v529 = vadd.f32 %v395, %v528
    %530 = vmatprep.mubr.bf16.mxu0 0
    %531 = vmatmul.mubr.bf16.gmra.mrb[0].mxu0 %v365
    %v532 = vpop.f32.mrb[0].mxu0
    %v533 = vadd.f32 %v391, %v532
    %v534 = vpop.f32.mrb[0].mxu0
    %v535 = vadd.f32 %v395, %v534
    %v536 = vpop.f32.mrb[0].mxu0
    %v537 = vadd.f32 %v391, %v536
    %v538 = vpop.f32.mrb[0].mxu0
    %v539 = vadd.f32 %v395, %v538
    %540 = vmatprep.mubr.bf16.mxu0 0
    %541 = vmatmul.mubr.bf16.gmra.mrb[0].mxu0 %v369
    %v542 = vpop.f32.mrb[0].mxu0
    %v543 = vadd.f32 %v391, %v542
    %v544 = vpop.f32.mrb[0].mxu0
    %v545 = vadd.f32 %v395, %v544
    %v546 = vpop.f32.mrb[0].mxu0
    %v547 = vadd.f32 %v391, %v546
    %v548 = vpop.f32.mrb[0].mxu0
    %v549 = vadd.f32 %v395, %v548
    %550 = vdwg.mxu0
    %v551 = vxor.u32 %v513, 2147483648
    %v552 = vxor.u32 %v517, 2147483648
    %v553 = vxor.u32 %v523, 2147483648
    %v554 = vxor.u32 %v527, 2147483648
    %v555 = vxor.u32 %v533, 2147483648
    %v556 = vxor.u32 %v537, 2147483648
    %v557 = vxor.u32 %v543, 2147483648
    %v558 = vxor.u32 %v547, 2147483648
    %v559 = vmul.f32 %v551, 1.442695
    %v560 = vpow.pop %v559
    %v561 = vmul.f32 %v552, 1.442695
    %v562 = vpow.pop %v561
    %v563 = vmul.f32 %v553, 1.442695
    %v564 = vpow.pop %v563
    %v565 = vmul.f32 %v554, 1.442695
    %v566 = vpow.pop %v565
    %v567 = vmul.f32 %v555, 1.442695
    %v568 = vpow.pop %v567
    %v569 = vmul.f32 %v556, 1.442695
    %v570 = vpow.pop %v569
    %v571 = vmul.f32 %v557, 1.442695
    %v572 = vpow.pop %v571
    %v573 = vmul.f32 %v558, 1.442695
    %v574 = vpow.pop %v573
    %v575 = vadd.f32 %v560, 1.0
    %v576 = vadd.f32 %v562, 1.0
    %v577 = vadd.f32 %v564, 1.0
    %v578 = vadd.f32 %v566, 1.0
    %v579 = vadd.f32 %v568, 1.0
    %v580 = vadd.f32 %v570, 1.0
    %v581 = vadd.f32 %v572, 1.0
    %v582 = vadd.f32 %v574, 1.0
    %v583 = vrcp.pop %v575
    %v584 = vmul.f32 1.0, %v583
    %v585 = vrcp.pop %v576
    %v586 = vmul.f32 1.0, %v585
    %v587 = vrcp.pop %v577
    %v588 = vmul.f32 1.0, %v587
    %v589 = vrcp.pop %v578
    %v590 = vmul.f32 1.0, %v589
    %v591 = vrcp.pop %v579
    %v592 = vmul.f32 1.0, %v591
    %v593 = vrcp.pop %v580
    %v594 = vmul.f32 1.0, %v593
    %v595 = vrcp.pop %v581
    %v596 = vmul.f32 1.0, %v595
    %v597 = vrcp.pop %v582
    %v598 = vmul.f32 1.0, %v597
    %607 = vrot.lane.b32.xlu0 %v515, 64
    %v608 = vpop.permute.xlu0 %607
    %609 = vrot.lane.b32.xlu0 %v519, 64
    %v610 = vpop.permute.xlu0 %609
    %611 = vrot.lane.b32.xlu0 %v525, 64
    %v612 = vpop.permute.xlu0 %611
    %613 = vrot.lane.b32.xlu0 %v529, 64
    %v614 = vpop.permute.xlu0 %613
    %615 = vrot.lane.b32.xlu0 %v535, 64
    %v616 = vpop.permute.xlu0 %615
    %617 = vrot.lane.b32.xlu0 %v539, 64
    %v618 = vpop.permute.xlu0 %617
    %619 = vrot.lane.b32.xlu0 %v545, 64
    %v620 = vpop.permute.xlu0 %619
    %621 = vrot.lane.b32.xlu0 %v549, 64
    %v622 = vpop.permute.xlu0 %621
    %v631 = vmul.f32 %v584, %v608
    %v632 = vmul.f32 %v586, %v610
    %v633 = vmul.f32 %v588, %v612
    %v634 = vmul.f32 %v590, %v614
    %v635 = vmul.f32 %v592, %v616
    %v636 = vmul.f32 %v594, %v618
    %v637 = vmul.f32 %v596, %v620
    %v638 = vmul.f32 %v598, %v622
    %v639 = vadd.f32 %v515, %v631
    %v640 = vadd.f32 %v519, %v632
    %v641 = vadd.f32 %v525, %v633
    %v642 = vadd.f32 %v529, %v634
    %v643 = vadd.f32 %v535, %v635
    %v644 = vadd.f32 %v539, %v636
    %v645 = vadd.f32 %v545, %v637
    %v646 = vadd.f32 %v549, %v638
    %v647 = vtanh.pop %v639
    %v648 = vtanh.pop %v640
    %v649 = vtanh.pop %v641
    %v650 = vtanh.pop %v642
    %v651 = vtanh.pop %v643
    %v652 = vtanh.pop %v644
    %v653 = vtanh.pop %v645
    %v654 = vtanh.pop %v646
    %v655 = vsub.f32 1.0, %v584
    %v656 = vsub.f32 1.0, %v586
    %v657 = vsub.f32 1.0, %v588
    %v658 = vsub.f32 1.0, %v590
    %v659 = vsub.f32 1.0, %v592
    %v660 = vsub.f32 1.0, %v594
    %v661 = vsub.f32 1.0, %v596
    %v662 = vsub.f32 1.0, %v598
    %671 = vrot.lane.b32.xlu0 %v647, 64
    %v672 = vpop.permute.xlu0 %671
    %673 = vrot.lane.b32.xlu0 %v648, 64
    %v674 = vpop.permute.xlu0 %673
    %675 = vrot.lane.b32.xlu0 %v649, 64
    %v676 = vpop.permute.xlu0 %675
    %677 = vrot.lane.b32.xlu0 %v650, 64
    %v678 = vpop.permute.xlu0 %677
    %679 = vrot.lane.b32.xlu0 %v651, 64
    %v680 = vpop.permute.xlu0 %679
    %681 = vrot.lane.b32.xlu0 %v652, 64
    %v682 = vpop.permute.xlu0 %681
    %683 = vrot.lane.b32.xlu0 %v653, 64
    %v684 = vpop.permute.xlu0 %683
    %685 = vrot.lane.b32.xlu0 %v654, 64
    %v686 = vpop.permute.xlu0 %685
    %v695 = vmul.f32 %v655, %v672
    %v696 = vmul.f32 %v656, %v674
    %v697 = vmul.f32 %v657, %v676
    %v698 = vmul.f32 %v658, %v678
    %v699 = vmul.f32 %v659, %v680
    %v700 = vmul.f32 %v660, %v682
    %v701 = vmul.f32 %v661, %v684
    %v702 = vmul.f32 %v662, %v686
    %711 = vrot.lane.b32.xlu0 %v84, 64
    %v712 = vpop.permute.xlu0 %711
    %713 = vrot.lane.b32.xlu0 %v85, 64
    %v714 = vpop.permute.xlu0 %713
    %715 = vrot.lane.b32.xlu0 %v86, 64
    %v716 = vpop.permute.xlu0 %715
    %717 = vrot.lane.b32.xlu0 %v87, 64
    %v718 = vpop.permute.xlu0 %717
    %719 = vrot.lane.b32.xlu0 %v88, 64
    %v720 = vpop.permute.xlu0 %719
    %721 = vrot.lane.b32.xlu0 %v89, 64
    %v722 = vpop.permute.xlu0 %721
    %723 = vrot.lane.b32.xlu0 %v90, 64
    %v724 = vpop.permute.xlu0 %723
    %725 = vrot.lane.b32.xlu0 %v91, 64
    %v726 = vpop.permute.xlu0 %725
    %v735 = vmul.f32 %v584, %v712
    %v736 = vmul.f32 %v586, %v714
    %v737 = vmul.f32 %v588, %v716
    %v738 = vmul.f32 %v590, %v718
    %v739 = vmul.f32 %v592, %v720
    %v740 = vmul.f32 %v594, %v722
    %v741 = vmul.f32 %v596, %v724
    %v742 = vmul.f32 %v598, %v726
    %v743 = vadd.f32 %v695, %v735
    %v744 = vadd.f32 %v696, %v736
    %v745 = vadd.f32 %v697, %v737
    %v746 = vadd.f32 %v698, %v738
    %v747 = vadd.f32 %v699, %v739
    %v748 = vadd.f32 %v700, %v740
    %v749 = vadd.f32 %v701, %v741
    %v750 = vadd.f32 %v702, %v742
    %v751 = vpack.c.bf16 %v744, %v743
    %v752 = vpack.c.bf16 %v746, %v745
    %v753 = vpack.c.bf16 %v748, %v747
    %v754 = vpack.c.bf16 %v750, %v749
    %v755 = vld [vmem:[#allocation5] sm:$0xf]
    %v756 = vld [vmem:[#allocation5 + $0x4] sm:$0xf]
    %v757 = vld [vmem:[#allocation5 + $0x8] sm:$0xf]
    %v758 = vld [vmem:[#allocation5 + $0xc] sm:$0xf]
    %v759 = vld [vmem:[#allocation5 + $0x10] sm:$0xf]
    %v760 = vld [vmem:[#allocation5 + $0x14] sm:$0xf]
    %v761 = vld [vmem:[#allocation5 + $0x18] sm:$0xf]
    %v762 = vld [vmem:[#allocation5 + $0x1c] sm:$0xf]
    %767 = vrot.lane.b32.xlu0 %v751, 64
    %v768 = vpop.permute.xlu0 %767
    %769 = vrot.lane.b32.xlu0 %v752, 64
    %v770 = vpop.permute.xlu0 %769
    %771 = vrot.lane.b32.xlu0 %v753, 64
    %v772 = vpop.permute.xlu0 %771
    %773 = vrot.lane.b32.xlu0 %v754, 64
    %v774 = vpop.permute.xlu0 %773
    %v783 = vunpack.c.l.b16 %v755
    %v784 = vunpack.c.l.b16 %v756
    %v785 = vunpack.c.l.b16 %v757
    %v786 = vunpack.c.l.b16 %v758
    %v787 = vunpack.c.l.b16 %v759
    %v788 = vunpack.c.l.b16 %v760
    %v789 = vunpack.c.l.b16 %v761
    %v790 = vunpack.c.l.b16 %v762
    %v791 = vpack.c.b16 %v784, %v783
    %v792 = vpack.c.b16 %v786, %v785
    %v793 = vpack.c.b16 %v788, %v787
    %v794 = vpack.c.b16 %v790, %v789
    %v800 = vsel %vm136, %v768, 0
    %v803 = vsel %vm136, %v770, 0
    %v806 = vsel %vm136, %v772, 0
    %v809 = vsel %vm136, %v774, 0
    %811 = vmatprep.subr.bf16.mxu0 0
    %812 = vmatpush1.bf16.msra.mxu0 %v791
    %813 = vmatprep.subr.bf16.mxu0 0
    %814 = vmatpush1.bf16.msra.mxu0 %v792
    %815 = vmatprep.subr.bf16.mxu0 0
    %816 = vmatpush1.bf16.msra.mxu0 %v793
    %817 = vmatprep.subr.bf16.mxu0 0
    %818 = vmatpush1.bf16.msra.mxu0 %v794
    %819 = vmatprep.subr.bf16.mxu0 0
    %820 = vmatpush1.bf16.msra.mxu0 0
    %821 = vmatprep.subr.bf16.mxu0 0
    %822 = vmatpush1.bf16.msra.mxu0 0
    %823 = vmatprep.subr.bf16.mxu0 0
    %824 = vmatpush1.bf16.msra.mxu0 0
    %825 = vmatprep.subr.bf16.mxu0 0
    %826 = vmatpush1.bf16.msra.mxu0 0
    %827 = vmatprep.subr.bf16.mxu0 0
    %828 = vmatpush1.bf16.msra.mxu0 0
    %829 = vmatprep.subr.bf16.mxu0 0
    %830 = vmatpush1.bf16.msra.mxu0 0
    %831 = vmatprep.subr.bf16.mxu0 0
    %832 = vmatpush1.bf16.msra.mxu0 0
    %833 = vmatprep.subr.bf16.mxu0 0
    %834 = vmatpush1.bf16.msra.mxu0 0
    %835 = vmatprep.subr.bf16.mxu0 0
    %836 = vmatpush1.bf16.msra.mxu0 0
    %837 = vmatprep.subr.bf16.mxu0 0
    %838 = vmatpush1.bf16.msra.mxu0 0
    %839 = vmatprep.subr.bf16.mxu0 0
    %840 = vmatpush1.bf16.msra.mxu0 0
    %841 = vmatprep.subr.bf16.mxu0 0
    %842 = vmatpush1.bf16.msra.mxu0 0
    %843 = vmatprep.mubr.bf16.mxu0 0
    %844 = vmatmul.mubr.bf16.gmra.mrb[0].mxu0 %v800
    %v845 = vpop.f32.mrb[0].mxu0
    %v846 = vadd.f32 %v57, %v845
    %v847 = vpop.f32.mrb[0].mxu0
    %v848 = vpop.f32.mrb[0].mxu0
    %v849 = vadd.f32 %v57, %v848
    %v850 = vpop.f32.mrb[0].mxu0
    %851 = vmatprep.mubr.bf16.mxu0 0
    %852 = vmatmul.mubr.bf16.gmra.mrb[0].mxu0 %v803
    %v853 = vpop.f32.mrb[0].mxu0
    %v854 = vadd.f32 %v57, %v853
    %v855 = vpop.f32.mrb[0].mxu0
    %v856 = vpop.f32.mrb[0].mxu0
    %v857 = vadd.f32 %v57, %v856
    %v858 = vpop.f32.mrb[0].mxu0
    %859 = vmatprep.mubr.bf16.mxu0 0
    %860 = vmatmul.mubr.bf16.gmra.mrb[0].mxu0 %v806
    %v861 = vpop.f32.mrb[0].mxu0
    %v862 = vadd.f32 %v57, %v861
    %v863 = vpop.f32.mrb[0].mxu0
    %v864 = vpop.f32.mrb[0].mxu0
    %v865 = vadd.f32 %v57, %v864
    %v866 = vpop.f32.mrb[0].mxu0
    %867 = vmatprep.mubr.bf16.mxu0 0
    %868 = vmatmul.mubr.bf16.gmra.mrb[0].mxu0 %v809
    %v869 = vpop.f32.mrb[0].mxu0
    %v870 = vadd.f32 %v57, %v869
    %v871 = vpop.f32.mrb[0].mxu0
    %v872 = vpop.f32.mrb[0].mxu0
    %v873 = vadd.f32 %v57, %v872
    %v874 = vpop.f32.mrb[0].mxu0
    %875 = vdwg.mxu0
    %v876 = vmax.f32 %v846, 0.0
    %v877 = vmax.f32 %v849, 0.0
    %v878 = vmax.f32 %v854, 0.0
    %v879 = vmax.f32 %v857, 0.0
    %v880 = vmax.f32 %v862, 0.0
    %v881 = vmax.f32 %v865, 0.0
    %v882 = vmax.f32 %v870, 0.0
    %v883 = vmax.f32 %v873, 0.0
    %v884 = vmul.f32 %v876, %v58
    %v885 = vmul.f32 %v877, %v58
    %v886 = vmul.f32 %v878, %v58
    %v887 = vmul.f32 %v879, %v58
    %v888 = vmul.f32 %v880, %v58
    %v889 = vmul.f32 %v881, %v58
    %v890 = vmul.f32 %v882, %v58
    %v891 = vmul.f32 %v883, %v58
    %v892 = vsel %vm136, %v884, 0.0
    %893 = vadd.xlane.f32.xlu0 %v892
    %v894 = vpop.xlane.xlu0 %893
    %v895 = vsel %vm136, %v885, 0.0
    %896 = vadd.xlane.f32.xlu0 %v895
    %v897 = vpop.xlane.xlu0 %896
    %v898 = vsel %vm136, %v886, 0.0
    %899 = vadd.xlane.f32.xlu0 %v898
    %v900 = vpop.xlane.xlu0 %899
    %v901 = vsel %vm136, %v887, 0.0
    %902 = vadd.xlane.f32.xlu0 %v901
    %v903 = vpop.xlane.xlu0 %902
    %v904 = vsel %vm136, %v888, 0.0
    %905 = vadd.xlane.f32.xlu0 %v904
    %v906 = vpop.xlane.xlu0 %905
    %v907 = vsel %vm136, %v889, 0.0
    %908 = vadd.xlane.f32.xlu0 %v907
    %v909 = vpop.xlane.xlu0 %908
    %v910 = vsel %vm136, %v890, 0.0
    %911 = vadd.xlane.f32.xlu0 %v910
    %v912 = vpop.xlane.xlu0 %911
    %v913 = vsel %vm136, %v891, 0.0
    %914 = vadd.xlane.f32.xlu0 %v913
    %v915 = vpop.xlane.xlu0 %914
    %v916 = vadd.f32 %v894, %v59
    %v917 = vadd.f32 %v897, %v59
    %v918 = vadd.f32 %v900, %v59
    %v919 = vadd.f32 %v903, %v59
    %v920 = vadd.f32 %v906, %v59
    %v921 = vadd.f32 %v909, %v59
    %v922 = vadd.f32 %v912, %v59
    %v923 = vadd.f32 %v915, %v59
    %932 = vrot.lane.b32.xlu0 %v743, 64
    %v933 = vpop.permute.xlu0 %932
    %934 = vrot.lane.b32.xlu0 %v744, 64
    %v935 = vpop.permute.xlu0 %934
    %936 = vrot.lane.b32.xlu0 %v745, 64
    %v937 = vpop.permute.xlu0 %936
    %938 = vrot.lane.b32.xlu0 %v746, 64
    %v939 = vpop.permute.xlu0 %938
    %940 = vrot.lane.b32.xlu0 %v747, 64
    %v941 = vpop.permute.xlu0 %940
    %942 = vrot.lane.b32.xlu0 %v748, 64
    %v943 = vpop.permute.xlu0 %942
    %944 = vrot.lane.b32.xlu0 %v749, 64
    %v945 = vpop.permute.xlu0 %944
    %946 = vrot.lane.b32.xlu0 %v750, 64
    %v947 = vpop.permute.xlu0 %946
    %956 = vst.msk [vmem:[#allocation7] sm:$0xff] %vm136, %v933
    %957 = vst.msk [vmem:[#allocation7 + $0x8] sm:$0xff] %vm136, %v935
    %958 = vst.msk [vmem:[#allocation7 + $0x10] sm:$0xff] %vm136, %v937
    %959 = vst.msk [vmem:[#allocation7 + $0x18] sm:$0xff] %vm136, %v939
    %960 = vst.msk [vmem:[#allocation7 + $0x20] sm:$0xff] %vm136, %v941
    %961 = vst.msk [vmem:[#allocation7 + $0x28] sm:$0xff] %vm136, %v943
    %962 = vst.msk [vmem:[#allocation7 + $0x30] sm:$0xff] %vm136, %v945
    %963 = vst.msk [vmem:[#allocation7 + $0x38] sm:$0xff] %vm136, %v947
    %965 = vset.pattern.permute.xlu0 0
    %966 = vperm.xlu0 %965, %v916
    %v967 = vpop.permute.xlu0 %966
    %970 = vset.pattern.permute.xlu0 0
    %971 = vperm.xlu0 %970, %v917
    %v972 = vpop.permute.xlu0 %971
    %975 = vset.pattern.permute.xlu0 0
    %976 = vperm.xlu0 %975, %v918
    %v977 = vpop.permute.xlu0 %976
    %980 = vset.pattern.permute.xlu0 0
    %981 = vperm.xlu0 %980, %v919
    %v982 = vpop.permute.xlu0 %981
    %985 = vset.pattern.permute.xlu0 0
    %986 = vperm.xlu0 %985, %v920
    %v987 = vpop.permute.xlu0 %986
    %990 = vset.pattern.permute.xlu0 0
    %991 = vperm.xlu0 %990, %v921
    %v992 = vpop.permute.xlu0 %991
    %995 = vset.pattern.permute.xlu0 0
    %996 = vperm.xlu0 %995, %v922
    %v997 = vpop.permute.xlu0 %996
    %1000 = vset.pattern.permute.xlu0 0
    %1001 = vperm.xlu0 %1000, %v923
    %v1002 = vpop.permute.xlu0 %1001
    %vm1004 = vcmask 1048064
    %1005 = vst.msk [vmem:[#allocation7] sm:$0xff] %vm1004, %v967
    %1006 = vst.msk [vmem:[#allocation7 + $0x8] sm:$0xff] %vm1004, %v972
    %1007 = vst.msk [vmem:[#allocation7 + $0x10] sm:$0xff] %vm1004, %v977
    %1008 = vst.msk [vmem:[#allocation7 + $0x18] sm:$0xff] %vm1004, %v982
    %1009 = vst.msk [vmem:[#allocation7 + $0x20] sm:$0xff] %vm1004, %v987
    %1010 = vst.msk [vmem:[#allocation7 + $0x28] sm:$0xff] %vm1004, %v992
    %1011 = vst.msk [vmem:[#allocation7 + $0x30] sm:$0xff] %vm1004, %v997
    %1012 = vst.msk [vmem:[#allocation7 + $0x38] sm:$0xff] %vm1004, %v1002
    // Predicated region
    $region34: #{tpu_custom_call.1} parent=1 // pred_check
      _
    $region35: #{tpu_custom_call.1} parent=1 // pred_check_branch
      %1014 = sbr.rel (0) target = $region37
    $region36: #{tpu_custom_call.1} parent=1 // pred_region
      %s1016 = ssub.s32 1024, 1024
      %1017 = vsyncadd [#allocation4], %s1016
      %s1018 = sshll.u32 [#allocation7], 4
      %s1019 = int_to_ptr.vmem [resolvable:$true] %s1018
      %1024 = dma.vmem_to_hbm [thread:$0]  %s1019, 1024, %s6, [#allocation4], 128, 128, 8
    $region37: #{tpu_custom_call.1} parent=1 // pred_fallthru
      _
    // Predicated region
    $region38: #{tpu_custom_call.1} parent=1 // pred_check
      _
    $region39: #{tpu_custom_call.1} parent=1 // pred_check_branch
      %1026 = sbr.rel (0) target = $region41
    $region40: #{tpu_custom_call.1} parent=1 // pred_region
      %1027 = dma.done [#allocation4], 1024
    $region41: #{tpu_custom_call.1} parent=1 // pred_fallthru
      _
    %1028 = vsyncpa [#allocation3], 1
    %1029 = vsyncpa [#allocation6], 1
    %1030 = vsyncpa [#allocation4], 1

</llo_original>
